<compile_context>
chip_gen: v6e
topology: v6e:2x2x1
jax: 0.10.0
libtpu: 0.0.40
codegen_flags: <defaults>
</compile_context>

<pallas_src>
import functools
import math

import jax
import jax.numpy as jnp
from jax.experimental import pallas as pl
from jax.experimental.pallas import tpu as pltpu


def _round_up(x, m):
    return ((x + m - 1) // m) * m


def _pick_ts(S, target_elems, align):
    """Sequence tile length: full extent if it fits in the target, else the
    largest align-multiple <= target (ragged last tile is masked)."""
    if S <= max(target_elems, align):
        return S
    return max(align, (target_elems // align) * align)


def _pcl_pooler_kernel(x_ref, w_ref, b_ref, o_ref, max_sc, *,
                       s0, ts, seq_len, global_attention, lo_mask, hi_mask):
    # x_ref: [tb, ts, F] streamed tile     w_ref: [F, Hp] VMEM-resident
    # b_ref: [1, Hp]     VMEM-resident     o_ref: [tb, Hp]
    # max_sc: [tb, F] running max (input dtype when bf16/f32, else f32)
    s = pl.program_id(1)

    @pl.when(s == 0)
    def _():
        max_sc[...] = jnp.full(max_sc.shape, -jnp.inf, dtype=max_sc.dtype)

    x = x_ref[...].astype(max_sc.dtype)                      # [tb, ts, F]

    def update(xv):
        max_sc[...] = jnp.maximum(max_sc[...], jnp.max(xv, axis=1))

    if lo_mask or hi_mask:
        # Only boundary tiles pay for the iota/compare/select mask.
        needs = None
        if lo_mask:
            needs = (s == 0)
        if hi_mask:
            hi = (s == pl.num_programs(1) - 1)
            needs = hi if needs is None else (needs | hi)

        @pl.when(needs)
        def _():
            pos = (jax.lax.broadcasted_iota(jnp.int32, x.shape, 1)
                   + (s + s0) * ts)
            valid = None
            if lo_mask:
                valid = pos >= global_attention
            if hi_mask:
                v_hi = pos < seq_len
                valid = v_hi if valid is None else (valid & v_hi)
            neg_inf = jnp.array(-jnp.inf, dtype=x.dtype)
            update(jnp.where(valid, x, neg_inf))

        @pl.when(jnp.logical_not(needs))
        def _():
            update(x)
    else:
        update(x)

    @pl.when(s == pl.num_programs(1) - 1)
    def _():
        pooled = max_sc[...].astype(w_ref.dtype)
        y = jnp.dot(pooled, w_ref[...], preferred_element_type=jnp.float32)
        y = y + b_ref[...]                                   # [1, Hp] bcast
        o_ref[...] = jnp.maximum(y, 0.0).astype(o_ref.dtype)  # ReLU


def pcl_pooler(hidden_states, weight, bias, *, global_attention,
               tb=None, ts_target_bytes=8 << 20, use_bf16_matmul=False):
    """hidden_states: [B, S, F], weight: [H, F] (PyTorch layout), bias: [H].

    Returns [B, H] float32.  Callers should wrap this in jax.jit so the
    padded weight/bias copies are not re-materialized per invocation.
    """
    B, S, F = hidden_states.shape
    H, F_w = weight.shape
    assert F_w == F, "weight inner dim must equal hidden_size * num_hidden_layers"
    assert 0 <= global_attention < S, "max over an empty sequence slice is undefined"

    # Batch tile: 8 when batch is 8-divisible (sublane-dense stores, MXU M>=8),
    # else the full batch extent (always a legal second-minor block dim).
    # TODO(synk): for v7x megacore, B//tb should be >= 2; a 2-way parallel
    # sequence split with a partial-max combine would cover B//tb == 1.
    if tb is None:
        tb = 8 if (B % 8 == 0) else B
    if B % tb != 0 or not (tb % 8 == 0 or tb == B):
        raise ValueError("tb must divide B and be 8-aligned or equal to B")

    # Output hidden dim padded to a lane-dense multiple of 128; weight is
    # pre-transposed so the matmul output is [*, Hp].  With use_bf16_matmul
    # the weight is stored in bf16 (halves residency and DMA bytes).
    Hp = max(128, _round_up(H, 128))
    w_dtype = jnp.bfloat16 if use_bf16_matmul else jnp.float32
    weight_t = jnp.zeros((F, Hp), w_dtype).at[:, :H].set(weight.T.astype(w_dtype))
    bias_p = jnp.zeros((1, Hp), jnp.float32).at[0, :H].set(bias.astype(jnp.float32))

    # Reduction dtype: keep bf16/f32 inputs in their own dtype (max is exact),
    # upcast anything else to f32.
    in_dtype = jnp.dtype(hidden_states.dtype)
    if in_dtype in (jnp.dtype(jnp.float32), jnp.dtype(jnp.bfloat16)):
        acc_dtype = hidden_states.dtype
    else:
        acc_dtype = jnp.float32

    itemsize = in_dtype.itemsize
    acc_itemsize = jnp.dtype(acc_dtype).itemsize
    align = max(8, 32 // itemsize)          # packed-sublane tile: 8/16/32

    # Physical VMEM per TensorCore: 128 MiB on v5e/v6e, 64 MiB on v7x.
    try:
        phys_vmem = int(pltpu.get_tpu_info().vmem_capacity_bytes)
    except Exception:
        phys_vmem = 64 << 20

    w_bytes = F * Hp * jnp.dtype(w_dtype).itemsize
    b_bytes = Hp * 4
    fixed_bytes = w_bytes + b_bytes + 2 * tb * Hp * 4 + tb * F * acc_itemsize

    # Size the streaming tile against both the requested target and the
    # chip's VMEM (2 buffers for the hidden_states stream + resident weight).
    stream_budget = max(int(0.55 * phys_vmem) - fixed_bytes,
                        2 * align * tb * F * itemsize)
    ts_cap = max(align, stream_budget // (2 * tb * F * itemsize))
    ts_target = max(align, min(ts_target_bytes // max(1, tb * F * itemsize), ts_cap))
    ts = _pick_ts(S, ts_target, align)

    # Skip fully-masked leading tiles entirely (no DMA, no compute).
    s0 = global_attention // ts
    lo_mask = (global_attention % ts) != 0
    hi_mask = (S % ts) != 0
    n_s = pl.cdiv(S, ts) - s0
    grid = (B // tb, n_s)

    x_block_bytes = tb * ts * F * itemsize
    vmem_bytes = 2 * x_block_bytes + fixed_bytes
    vmem_limit = int(min(max(int(1.25 * vmem_bytes) + (4 << 20), 32 << 20),
                         int(0.9 * phys_vmem)))

    cost = pl.CostEstimate(
        flops=2 * B * F * Hp,
        transcendentals=0,
        bytes_accessed=(B * min(n_s * ts, S) * F * itemsize
                        + w_bytes + b_bytes + B * Hp * 4),
    )

    kernel = functools.partial(
        _pcl_pooler_kernel,
        s0=s0, ts=ts, seq_len=S, global_attention=global_attention,
        lo_mask=lo_mask, hi_mask=hi_mask,
    )

    out_padded = pl.pallas_call(
        kernel,
        out_shape=jax.ShapeDtypeStruct((B, Hp), jnp.float32),
        grid_spec=pltpu.PrefetchScalarGridSpec(
            num_scalar_prefetch=0,
            grid=grid,
            in_specs=[
                # Streaming input: tiles over (batch, seq); seq offset skips
                # fully-masked tiles.
                pl.BlockSpec((tb, ts, F), lambda b, s: (b, s + s0, 0)),
                # Weight / bias: whole-array VMEM residency (single copy,
                # not pipelined / not double-buffered).
                pl.BlockSpec(memory_space=pltpu.MemorySpace.VMEM),
                pl.BlockSpec(memory_space=pltpu.MemorySpace.VMEM),
            ],
            # Same block across the s (reduction) axis -> accumulator output.
            out_specs=pl.BlockSpec((tb, Hp), lambda b, s: (b, 0)),
            scratch_shapes=[pltpu.VMEM((tb, F), acc_dtype)],
        ),
        compiler_params=pltpu.CompilerParams(
            dimension_semantics=("parallel", "arbitrary"),
            vmem_limit_bytes=vmem_limit,
        ),
        cost_estimate=cost,
    )(hidden_states, weight_t, bias_p)

    return out_padded[:, :H]


def _reference(hidden_states, weight, bias, global_attention):
    pooled = jnp.max(hidden_states[:, global_attention:, :], axis=1)
    return jnp.maximum(pooled @ weight.T + bias, 0.0)


if __name__ == "__main__":
    # Small config consistent with the module.
    batch = 2
    seq = 8
    hidden_size = 32
    num_hidden_layers = 4
    global_attention = 1
    feat = hidden_size * num_hidden_layers  # 128

    key = jax.random.PRNGKey(0)
    kx, kw, kb, kx2 = jax.random.split(key, 4)

    hidden_states = jax.random.normal(kx, (batch, seq, feat), dtype=jnp.float32)

    # Deterministic Linear params (PyTorch layout: weight [H, F], bias [H]).
    bound = 1.0 / math.sqrt(feat)
    weight = jax.random.uniform(kw, (hidden_size, feat), jnp.float32,
                                minval=-bound, maxval=bound)
    bias = jax.random.uniform(kb, (hidden_size,), jnp.float32,
                              minval=-bound, maxval=bound)

    out = pcl_pooler(hidden_states, weight, bias,
                     global_attention=global_attention)
    out = jax.block_until_ready(out)
    ref = _reference(hidden_states, weight, bias, global_attention)
    assert out.shape == (batch, hidden_size)
    assert jnp.allclose(out, ref, atol=1e-5, rtol=1e-5), "mismatch vs reference"

    # Second check: ragged sequence + skipped fully-masked tiles + boundary
    # masking (tiny tile forced via ts_target_bytes).
    seq2, ga2 = 20, 9
    hs2 = jax.random.normal(kx2, (batch, seq2, feat), dtype=jnp.float32)
    out2 = pcl_pooler(hs2, weight, bias, global_attention=ga2,
                      ts_target_bytes=batch * feat * 4 * 8)
    out2 = jax.block_until_ready(out2)
    ref2 = _reference(hs2, weight, bias, ga2)
    assert jnp.allclose(out2, ref2, atol=1e-5, rtol=1e-5), "mismatch (ragged)"

    print("KERNEL_OK")
</pallas_src>

<mosaic_0001>
module attributes {stable_mosaic.version = 11 : i64} {
  func.func @_pcl_pooler_kernel(%arg0: i32, %arg1: i32, %arg2: memref<2x8x128xf32, #tpu.memory_space<vmem>>, %arg3: memref<128x128xf32, #tpu.memory_space<vmem>>, %arg4: memref<1x128xf32, #tpu.memory_space<vmem>>, %arg5: memref<2x128xf32, #tpu.memory_space<vmem>>, %arg6: memref<2x128xf32, #tpu.memory_space<vmem>>) attributes {dimension_semantics = [#tpu.dimension_semantics<parallel>, #tpu.dimension_semantics<arbitrary>], iteration_bounds = array<i64: 1, 1>, scalar_prefetch = 0 : i64, scratch_operands = 1 : i64, tpu.core_type = #tpu.core_type<tc>, window_params = [{transform_indices = @transform_0, window_bounds = array<i64: 2, 8, 128>}, {pipeline_mode = #tpu.pipeline_mode<synchronous>, transform_indices = @transform_1, window_bounds = array<i64: 128, 128>}, {pipeline_mode = #tpu.pipeline_mode<synchronous>, transform_indices = @transform_2, window_bounds = array<i64: 1, 128>}, {transform_indices = @transform_3, window_bounds = array<i64: 2, 128>}]} {
    %c0_i32 = arith.constant 0 : i32
    %0 = arith.cmpi eq, %arg1, %c0_i32 : i32
    %1 = arith.extui %0 : i1 to i32
    %c0_i32_0 = arith.constant 0 : i32
    %2 = arith.cmpi ne, %1, %c0_i32_0 : i32
    scf.if %2 {
      %cst = arith.constant 0xFF800000 : f32
      %13 = vector.broadcast %cst : f32 to vector<2x128xf32>
      %c0_8 = arith.constant 0 : index
      %c0_9 = arith.constant 0 : index
      %14 = vector.load %arg6[%c0_8, %c0_9] : memref<2x128xf32, #tpu.memory_space<vmem>>, vector<2x128xf32>
      tpu.vector_store %arg6[%c0_8, %c0_9], %13 {strides = array<i32>} : memref<2x128xf32, #tpu.memory_space<vmem>>, vector<2x128xf32>,
    } else {
    }
    %c0 = arith.constant 0 : index
    %c0_1 = arith.constant 0 : index
    %c0_2 = arith.constant 0 : index
    %3 = vector.load %arg2[%c0, %c0_1, %c0_2] : memref<2x8x128xf32, #tpu.memory_space<vmem>>, vector<2x8x128xf32>
    %c0_i32_3 = arith.constant 0 : i32
    %4 = arith.cmpi eq, %arg1, %c0_i32_3 : i32
    %5 = arith.extui %4 : i1 to i32
    %c0_i32_4 = arith.constant 0 : i32
    %6 = arith.cmpi ne, %5, %c0_i32_4 : i32
    scf.if %6 {
      %13 = tpu.iota {dimensions = array<i32: 1>} : vector<2x8x128xi32>
      %c0_i32_8 = arith.constant 0 : i32
      %14 = arith.addi %arg1, %c0_i32_8 : i32
      %c8_i32 = arith.constant 8 : i32
      %15 = arith.muli %14, %c8_i32 : i32
      %16 = vector.broadcast %15 : i32 to vector<2x8x128xi32>
      %17 = arith.addi %13, %16 : vector<2x8x128xi32>
      %c1_i32 = arith.constant 1 : i32
      %18 = vector.broadcast %c1_i32 : i32 to vector<2x8x128xi32>
      %19 = arith.cmpi sge, %17, %18 : vector<2x8x128xi32>
      %cst = arith.constant 0xFF800000 : f32
      %20 = vector.broadcast %cst : f32 to vector<2x8x128xf32>
      %21 = arith.select %19, %3, %20 : vector<2x8x128xi1>, vector<2x8x128xf32>
      %c0_9 = arith.constant 0 : index
      %c0_10 = arith.constant 0 : index
      %22 = vector.load %arg6[%c0_9, %c0_10] : memref<2x128xf32, #tpu.memory_space<vmem>>, vector<2x128xf32>
      %cst_11 = arith.constant dense<0xFF800000> : vector<2x128xf32>
      %23 = vector.multi_reduction <maximumf>, %21, %cst_11 [1] : vector<2x8x128xf32> to vector<2x128xf32>
      %24 = arith.maximumf %22, %23 : vector<2x128xf32>
      %c0_12 = arith.constant 0 : index
      %c0_13 = arith.constant 0 : index
      %25 = vector.load %arg6[%c0_12, %c0_13] : memref<2x128xf32, #tpu.memory_space<vmem>>, vector<2x128xf32>
      tpu.vector_store %arg6[%c0_12, %c0_13], %24 {strides = array<i32>} : memref<2x128xf32, #tpu.memory_space<vmem>>, vector<2x128xf32>,
    } else {
    }
    %true = arith.constant true
    %7 = arith.xori %4, %true : i1
    %8 = arith.extui %7 : i1 to i32
    %c0_i32_5 = arith.constant 0 : i32
    %9 = arith.cmpi ne, %8, %c0_i32_5 : i32
    scf.if %9 {
      %c0_8 = arith.constant 0 : index
      %c0_9 = arith.constant 0 : index
      %13 = vector.load %arg6[%c0_8, %c0_9] : memref<2x128xf32, #tpu.memory_space<vmem>>, vector<2x128xf32>
      %cst = arith.constant dense<0xFF800000> : vector<2x128xf32>
      %14 = vector.multi_reduction <maximumf>, %3, %cst [1] : vector<2x8x128xf32> to vector<2x128xf32>
      %15 = arith.maximumf %13, %14 : vector<2x128xf32>
      %c0_10 = arith.constant 0 : index
      %c0_11 = arith.constant 0 : index
      %16 = vector.load %arg6[%c0_10, %c0_11] : memref<2x128xf32, #tpu.memory_space<vmem>>, vector<2x128xf32>
      tpu.vector_store %arg6[%c0_10, %c0_11], %15 {strides = array<i32>} : memref<2x128xf32, #tpu.memory_space<vmem>>, vector<2x128xf32>,
    } else {
    }
    %c0_i32_6 = arith.constant 0 : i32
    %10 = arith.cmpi eq, %arg1, %c0_i32_6 : i32
    %11 = arith.extui %10 : i1 to i32
    %c0_i32_7 = arith.constant 0 : i32
    %12 = arith.cmpi ne, %11, %c0_i32_7 : i32
    scf.if %12 {
      %c0_8 = arith.constant 0 : index
      %c0_9 = arith.constant 0 : index
      %13 = vector.load %arg6[%c0_8, %c0_9] : memref<2x128xf32, #tpu.memory_space<vmem>>, vector<2x128xf32>
      %c0_10 = arith.constant 0 : index
      %c0_11 = arith.constant 0 : index
      %14 = vector.load %arg3[%c0_10, %c0_11] : memref<128x128xf32, #tpu.memory_space<vmem>>, vector<128x128xf32>
      %cst = arith.constant dense<0.000000e+00> : vector<2x128xf32>
      %15 = tpu.matmul %13, %14, %cst {dimension_numbers = #tpu.dot_dimension_numbers<[1], [0], [0], [1], [0, 0, 1, 1], [], []>} : vector<2x128xf32>, vector<128x128xf32>, vector<2x128xf32> -> vector<2x128xf32>
      %c0_12 = arith.constant 0 : index
      %c0_13 = arith.constant 0 : index
      %16 = vector.load %arg4[%c0_12, %c0_13] : memref<1x128xf32, #tpu.memory_space<vmem>>, vector<1x128xf32>
      %17 = vector.broadcast %16 : vector<1x128xf32> to vector<2x128xf32>
      %18 = arith.addf %15, %17 : vector<2x128xf32>
      %cst_14 = arith.constant 0.000000e+00 : f32
      %19 = vector.broadcast %cst_14 : f32 to vector<2x128xf32>
      %20 = arith.maximumf %18, %19 : vector<2x128xf32>
      %c0_15 = arith.constant 0 : index
      %c0_16 = arith.constant 0 : index
      %21 = vector.load %arg5[%c0_15, %c0_16] : memref<2x128xf32, #tpu.memory_space<vmem>>, vector<2x128xf32>
      tpu.vector_store %arg5[%c0_15, %c0_16], %20 {strides = array<i32>} : memref<2x128xf32, #tpu.memory_space<vmem>>, vector<2x128xf32>,
    } else {
    }
    return
  }
  func.func @transform_0(%arg0: i32, %arg1: i32) -> (i32, i32, i32) {
    %c0_i32 = arith.constant 0 : i32
    %0 = arith.addi %arg1, %c0_i32 : i32
    %c0_i32_0 = arith.constant 0 : i32
    %c0_i32_1 = arith.constant 0 : i32
    return %arg0, %0, %c0_i32_0 : i32, i32, i32
  }
  func.func @transform_1(%arg0: i32, %arg1: i32) -> (i32, i32) {
    %c0_i32 = arith.constant 0 : i32
    %c0_i32_0 = arith.constant 0 : i32
    %c0_i32_1 = arith.constant 0 : i32
    return %c0_i32, %c0_i32_0 : i32, i32
  }
  func.func @transform_2(%arg0: i32, %arg1: i32) -> (i32, i32) {
    %c0_i32 = arith.constant 0 : i32
    %c0_i32_0 = arith.constant 0 : i32
    %c0_i32_1 = arith.constant 0 : i32
    return %c0_i32, %c0_i32_0 : i32, i32
  }
  func.func @transform_3(%arg0: i32, %arg1: i32) -> (i32, i32) {
    %c0_i32 = arith.constant 0 : i32
    %c0_i32_0 = arith.constant 0 : i32
    return %arg0, %c0_i32 : i32, i32
  }
}

</mosaic_0001>

<llo_original>
// kernel: tpu_custom_call.1
$region0: #{tpu_custom_call.1}
  #allocation0 [shape = 'u32[]', space=smem, size = 0x4, offset = 0x4, fixed_abs, tag = 'smem constant byte address 0x4 - core index']
  #allocation1 [shape = 'u32[144,128]{1,0:T(1,128)}', space=vmem, size = 0x12000, scoped, tag = 'internal scratch']
  #allocation2 [shape = 'f32[2,128]{1,0:T(2,128)}', space=vmem, size = 0x400, scoped, tag = 'scratch operand']
  %s0 = inlined_call_operand.hbm [shape: f32[2,8,128], index: 0, kind: input, shape index: {}]
  %s1 = inlined_call_operand.hbm [shape: f32[128,128], index: 1, kind: input, shape index: {}]
  %s2 = inlined_call_operand.vmem [shape: f32[1,128], index: 2, kind: input, shape index: {}]
  %s3 = inlined_call_operand.hbm [shape: f32[2,128], index: 3, kind: output, shape index: {}]
  %s4 = sld [smem:[#allocation0]]
  $region46: #{tpu_custom_call.1} parent=0
    _
  %s6 = ssub.s32 1, %s4
  %s7 = scalar_select 0, %s6, %s4
  $region1: #{tpu_custom_call.1} parent=0
    #allocation3 [shape = 'u8[8192]{0}', space=vmem, size = 0x2000, scoped, tag = 'input window, operand 0, single buffered']
    #allocation4 [shape = 's32[1]{0}', space=sflag, size = 0x4, scoped, tag = 'scoped memory for tpu_custom_call.1']
    #allocation5 [shape = 's32[1]{0}', space=sflag, size = 0x4, scoped, tag = 'scoped memory for tpu_custom_call.1']
    #allocation6 [shape = 'u8[65536]{0}', space=vmem, size = 0x10000, scoped, tag = 'input window, operand 1, single buffered']
    #allocation7 [shape = 's32[1]{0}', space=sflag, size = 0x4, scoped, tag = 'scoped memory for tpu_custom_call.1']
    #allocation8 [shape = 'u8[1024]{0}', space=vmem, size = 0x400, scoped, tag = 'output window, operand 0, single buffered']
    %8 = vsyncpa [#allocation4], 0
    %9 = vsyncpa [#allocation7], 0
    %10 = vsyncpa [#allocation5], 0
    // Predicated region
    $region2: #{tpu_custom_call.1} parent=1 // pred_check
      _
    $region3: #{tpu_custom_call.1} parent=1 // pred_check_branch
      %12 = sbr.rel (0) target = $region5
    $region4: #{tpu_custom_call.1} parent=1 // pred_region
      %s14 = ssub.s32 256, 256
      %15 = vsyncadd [#allocation4], %s14
      %s16 = sshll.u32 [#allocation3], 4
      %s17 = int_to_ptr.vmem [resolvable:$true] %s16
      %22 = dma.hbm_to_vmem [thread:$0]  %s0, 256, %s17, [#allocation4], 128, 128, 8
    $region5: #{tpu_custom_call.1} parent=1 // pred_fallthru
      _
    // Predicated region
    $region6: #{tpu_custom_call.1} parent=1 // pred_check
      _
    $region7: #{tpu_custom_call.1} parent=1 // pred_check_branch
      %24 = sbr.rel (0) target = $region9
    $region8: #{tpu_custom_call.1} parent=1 // pred_region
      %s26 = ssub.s32 2048, 2048
      %27 = vsyncadd [#allocation7], %s26
      %s28 = sshll.u32 [#allocation6], 4
      %s29 = int_to_ptr.vmem [resolvable:$true] %s28
      %34 = dma.hbm_to_vmem [thread:$0]  %s1, 2048, %s29, [#allocation7], 128, 128, 8
    $region9: #{tpu_custom_call.1} parent=1 // pred_fallthru
      _
    // Predicated region
    $region10: #{tpu_custom_call.1} parent=1 // pred_check
      _
    $region11: #{tpu_custom_call.1} parent=1 // pred_check_branch
      %36 = sbr.rel (0) target = $region13
    $region12: #{tpu_custom_call.1} parent=1 // pred_region
      _
    $region13: #{tpu_custom_call.1} parent=1 // pred_fallthru
      _
    // Predicated region
    $region14: #{tpu_custom_call.1} parent=1 // pred_check
      _
    $region15: #{tpu_custom_call.1} parent=1 // pred_check_branch
      %38 = sbr.rel (0) target = $region17
    $region16: #{tpu_custom_call.1} parent=1 // pred_region
      %39 = dma.done [#allocation4], 256
    $region17: #{tpu_custom_call.1} parent=1 // pred_fallthru
      _
    // Predicated region
    $region18: #{tpu_custom_call.1} parent=1 // pred_check
      _
    $region19: #{tpu_custom_call.1} parent=1 // pred_check_branch
      %41 = sbr.rel (0) target = $region21
    $region20: #{tpu_custom_call.1} parent=1 // pred_region
      %42 = dma.done [#allocation7], 2048
    $region21: #{tpu_custom_call.1} parent=1 // pred_fallthru
      _
    %p43 = scmp.eq.s32.totalorder 0, 0
    // Predicated region
    $region22: #{tpu_custom_call.1} parent=1 // pred_check
      %p44 = pneg %p43
    $region23: #{tpu_custom_call.1} parent=1 // pred_check_branch
      %46 = sbr.rel (%p44) target = $region25
    $region24: #{tpu_custom_call.1} parent=1 // pred_region
      %47 = vst [vmem:[#allocation2] sm:$0x3] -inf
    $region25: #{tpu_custom_call.1} parent=1 // pred_fallthru
      _
    %v48 = vld [vmem:[#allocation3] sm:$0xff]
    %v49 = vld [vmem:[#allocation3 + $0x8] sm:$0xff]
    // Predicated region
    $region26: #{tpu_custom_call.1} parent=1 // pred_check
      %p50 = pneg %p43
    $region27: #{tpu_custom_call.1} parent=1 // pred_check_branch
      %52 = sbr.rel (%p50) target = $region29
    $region28: #{tpu_custom_call.1} parent=1 // pred_region
      %v53 = vlaneseq
      %v54 = vshrl.u32 %v53, 7
      %s55 = smul.u32 0, 8
      %v56 = vstv %s55
      %v57 = vadd.s32 %v54, %v56
      %vm58 = vcmp.ge.s32.totalorder %v57, 1
      %v59 = vsel %vm58, %v48, -inf
      %v60 = vsel %vm58, %v49, -inf
      %v61 = vld [vmem:[#allocation2] sm:$0x3]
      %v62 = vrot.slane %v59, 4
      %v63 = vmax.f32 %v59, %v62
      %v64 = vrot.slane %v63, 2
      %v65 = vmax.f32 %v63, %v64
      %v66 = vrot.slane %v65, 1
      %v67 = vmax.f32 %v65, %v66
      %v68 = vrot.slane %v60, 4
      %v69 = vmax.f32 %v60, %v68
      %v70 = vrot.slane %v69, 2
      %v71 = vmax.f32 %v69, %v70
      %v72 = vrot.slane %v71, 1
      %v73 = vmax.f32 %v71, %v72
      %vm76 = vcmask 1041409
      %v77 = vsel %vm76, %v73, %v67
      %v79 = vmax.f32 %v61, %v77
      %80 = vst [vmem:[#allocation2] sm:$0x3] %v79
    $region29: #{tpu_custom_call.1} parent=1 // pred_fallthru
      _
    %p81 = scmp.ne.s32.totalorder 0, 0
    // Predicated region
    $region30: #{tpu_custom_call.1} parent=1 // pred_check
      %p82 = pneg %p81
    $region31: #{tpu_custom_call.1} parent=1 // pred_check_branch
      %84 = sbr.rel (%p82) target = $region33
    $region32: #{tpu_custom_call.1} parent=1 // pred_region
      %v85 = vld [vmem:[#allocation2] sm:$0x3]
      %v86 = vrot.slane %v48, 4
      %v87 = vmax.f32 %v48, %v86
      %v88 = vrot.slane %v87, 2
      %v89 = vmax.f32 %v87, %v88
      %v90 = vrot.slane %v89, 1
      %v91 = vmax.f32 %v89, %v90
      %v92 = vrot.slane %v49, 4
      %v93 = vmax.f32 %v49, %v92
      %v94 = vrot.slane %v93, 2
      %v95 = vmax.f32 %v93, %v94
      %v96 = vrot.slane %v95, 1
      %v97 = vmax.f32 %v95, %v96
      %vm100 = vcmask 1041409
      %v101 = vsel %vm100, %v97, %v91
      %v103 = vmax.f32 %v85, %v101
      %104 = vst [vmem:[#allocation2] sm:$0x3] %v103
    $region33: #{tpu_custom_call.1} parent=1 // pred_fallthru
      _
    // Predicated region
    $region34: #{tpu_custom_call.1} parent=1 // pred_check
      %p105 = pneg %p43
    $region35: #{tpu_custom_call.1} parent=1 // pred_check_branch
      %107 = sbr.rel (%p105) target = $region37
    $region36: #{tpu_custom_call.1} parent=1 // pred_region
      %v108 = vld [vmem:[#allocation2] sm:$0x3]
      %v109 = vld [vmem:[#allocation6] sm:$0xff]
      %v110 = vld [vmem:[#allocation6 + $0x8] sm:$0xff]
      %v111 = vld [vmem:[#allocation6 + $0x10] sm:$0xff]
      %v112 = vld [vmem:[#allocation6 + $0x18] sm:$0xff]
      %v113 = vld [vmem:[#allocation6 + $0x20] sm:$0xff]
      %v114 = vld [vmem:[#allocation6 + $0x28] sm:$0xff]
      %v115 = vld [vmem:[#allocation6 + $0x30] sm:$0xff]
      %v116 = vld [vmem:[#allocation6 + $0x38] sm:$0xff]
      %v117 = vld [vmem:[#allocation6 + $0x40] sm:$0xff]
      %v118 = vld [vmem:[#allocation6 + $0x48] sm:$0xff]
      %v119 = vld [vmem:[#allocation6 + $0x50] sm:$0xff]
      %v120 = vld [vmem:[#allocation6 + $0x58] sm:$0xff]
      %v121 = vld [vmem:[#allocation6 + $0x60] sm:$0xff]
      %v122 = vld [vmem:[#allocation6 + $0x68] sm:$0xff]
      %v123 = vld [vmem:[#allocation6 + $0x70] sm:$0xff]
      %v124 = vld [vmem:[#allocation6 + $0x78] sm:$0xff]
      %v125 = vld [vmem:[%s2] sm:$0x1]
      %v127 = vlaneseq
      %v128 = vshrl.u32 %v127, 7
      %v129 = vsub.s32 0, %v128
      %v130 = vrot.slane %v125, %v129
      %132 = vmatprep.subr.mxu0 0.0
      %133 = vmatpush1.msra.mxu0 %v124
      %134 = vmatprep.subr.mxu0 0.0
      %135 = vmatpush1.msra.mxu0 %v123
      %136 = vmatprep.subr.mxu0 0.0
      %137 = vmatpush1.msra.mxu0 %v122
      %138 = vmatprep.subr.mxu0 0.0
      %139 = vmatpush1.msra.mxu0 %v121
      %140 = vmatprep.subr.mxu0 0.0
      %141 = vmatpush1.msra.mxu0 %v120
      %142 = vmatprep.subr.mxu0 0.0
      %143 = vmatpush1.msra.mxu0 %v119
      %144 = vmatprep.subr.mxu0 0.0
      %145 = vmatpush1.msra.mxu0 %v118
      %146 = vmatprep.subr.mxu0 0.0
      %147 = vmatpush1.msra.mxu0 %v117
      %148 = vmatprep.subr.mxu0 0.0
      %149 = vmatpush1.msra.mxu0 %v116
      %150 = vmatprep.subr.mxu0 0.0
      %151 = vmatpush1.msra.mxu0 %v115
      %152 = vmatprep.subr.mxu0 0.0
      %153 = vmatpush1.msra.mxu0 %v114
      %154 = vmatprep.subr.mxu0 0.0
      %155 = vmatpush1.msra.mxu0 %v113
      %156 = vmatprep.subr.mxu0 0.0
      %157 = vmatpush1.msra.mxu0 %v112
      %158 = vmatprep.subr.mxu0 0.0
      %159 = vmatpush1.msra.mxu0 %v111
      %160 = vmatprep.subr.mxu0 0.0
      %161 = vmatpush1.msra.mxu0 %v110
      %162 = vmatprep.subr.mxu0 0.0
      %163 = vmatpush1.msra.mxu0 %v109
      %164 = vmatprep.subr.mxu0 0.0
      %165 = vmatpush2.msra.mxu0 0.0
      %166 = vmatprep.subr.mxu0 0.0
      %167 = vmatpush2.msra.mxu0 0.0
      %168 = vmatprep.subr.mxu0 0.0
      %169 = vmatpush2.msra.mxu0 0.0
      %170 = vmatprep.subr.mxu0 0.0
      %171 = vmatpush2.msra.mxu0 0.0
      %172 = vmatprep.subr.mxu0 0.0
      %173 = vmatpush2.msra.mxu0 0.0
      %174 = vmatprep.subr.mxu0 0.0
      %175 = vmatpush2.msra.mxu0 0.0
      %176 = vmatprep.subr.mxu0 0.0
      %177 = vmatpush2.msra.mxu0 0.0
      %178 = vmatprep.subr.mxu0 0.0
      %179 = vmatpush2.msra.mxu0 0.0
      %180 = vmatprep.subr.mxu0 0.0
      %181 = vmatpush2.msra.mxu0 0.0
      %182 = vmatprep.subr.mxu0 0.0
      %183 = vmatpush2.msra.mxu0 0.0
      %184 = vmatprep.subr.mxu0 0.0
      %185 = vmatpush2.msra.mxu0 0.0
      %186 = vmatprep.subr.mxu0 0.0
      %187 = vmatpush2.msra.mxu0 0.0
      %188 = vmatprep.subr.mxu0 0.0
      %189 = vmatpush2.msra.mxu0 0.0
      %190 = vmatprep.subr.mxu0 0.0
      %191 = vmatpush2.msra.mxu0 0.0
      %192 = vmatprep.subr.mxu0 0.0
      %193 = vmatpush2.msra.mxu0 0.0
      %194 = vmatprep.subr.mxu0 0.0
      %195 = vmatpush2.msra.mxu0 0.0
      %196 = vmatprep.mubr.f32.mxu0 0.0
      %197 = vmatmul.mubr.f32.gmra.mxu0 %v108
      %v198 = vpop.f32.mrf.mxu0
      %v199 = vadd.f32 %v130, %v198
      %v200 = vpop.f32.mrf.mxu0
      %201 = vdwg.mxu0
      %v202 = vmax.f32 %v199, 0.0
      %203 = vst [vmem:[#allocation8] sm:$0x3] %v202
    $region37: #{tpu_custom_call.1} parent=1 // pred_fallthru
      _
    // Predicated region
    $region38: #{tpu_custom_call.1} parent=1 // pred_check
      _
    $region39: #{tpu_custom_call.1} parent=1 // pred_check_branch
      %205 = sbr.rel (0) target = $region41
    $region40: #{tpu_custom_call.1} parent=1 // pred_region
      %s207 = ssub.s32 32, 32
      %208 = vsyncadd [#allocation5], %s207
      %s210 = sshll.u32 [#allocation8], 4
      %s211 = int_to_ptr.vmem [resolvable:$true] %s210
      %213 = dma.vmem_to_hbm [thread:$0]  %s211, 32, %s3, [#allocation5]
    $region41: #{tpu_custom_call.1} parent=1 // pred_fallthru
      _
    // Predicated region
    $region42: #{tpu_custom_call.1} parent=1 // pred_check
      _
    $region43: #{tpu_custom_call.1} parent=1 // pred_check_branch
      %215 = sbr.rel (0) target = $region45
    $region44: #{tpu_custom_call.1} parent=1 // pred_region
      %216 = dma.done [#allocation5], 32
    $region45: #{tpu_custom_call.1} parent=1 // pred_fallthru
      _
    %217 = vsyncpa [#allocation4], 1
    %218 = vsyncpa [#allocation7], 1
    %219 = vsyncpa [#allocation5], 1

</llo_original>
